<compile_context>
chip_gen: v7x
topology: tpu7x:2x2x1
jax: 0.10.0
libtpu: 0.0.40
codegen_flags: <defaults>
</compile_context>

<pallas_src>
import jax
import jax.numpy as jnp
from jax.experimental import pallas as pl
from jax.experimental.pallas import tpu as pltpu


def _linear_kernel(x_ref, wt_ref, b_ref, o_ref):
    # x_ref : (B, IN)   VMEM, activations
    # wt_ref: (IN, OUT) VMEM, weight pre-transposed ONCE at init (MXU-native KxN)
    # b_ref : (1, OUT)  VMEM, bias row
    # o_ref : (B, OUT)  VMEM
    y = jnp.dot(x_ref[...], wt_ref[...], preferred_element_type=jnp.float32)
    o_ref[...] = (b_ref[...] + y).astype(o_ref.dtype)


def init_projection_params(weight, bias):
    """One-time parameter prep, hoisted out of the per-call path.

    weight: (OUT, IN) float32   PyTorch nn.Linear layout
    bias:   (OUT,)    float32

    Returns (weight_t, bias_row) with weight_t in MXU-native (IN, OUT) = (K, N)
    orientation and bias as a (1, OUT) row, so the per-call kernel needs no
    transpose and no reshape.
    """
    return jnp.asarray(weight).T, jnp.asarray(bias).reshape(1, -1)


def linear_projection(x, weight_t, bias_row):
    """y = x @ W^T + b (== x @ weight_t + bias_row) as a single grid-free
    Pallas call on unpadded whole-array VMEM blocks.

    x:        (B, IN)   float32
    weight_t: (IN, OUT) float32  (from init_projection_params)
    bias_row: (1, OUT)  float32  (from init_projection_params)
    """
    B, IN = x.shape
    OUT = weight_t.shape[1]
    itemsize = jnp.dtype(x.dtype).itemsize

    cost = pl.CostEstimate(
        flops=2 * B * IN * OUT,
        bytes_accessed=itemsize * (B * IN + IN * OUT + OUT + B * OUT),
        transcendentals=0,
    )

    return pl.pallas_call(
        _linear_kernel,
        out_shape=jax.ShapeDtypeStruct((B, OUT), x.dtype),
        in_specs=[
            pl.BlockSpec(memory_space=pltpu.MemorySpace.VMEM),
            pl.BlockSpec(memory_space=pltpu.MemorySpace.VMEM),
            pl.BlockSpec(memory_space=pltpu.MemorySpace.VMEM),
        ],
        out_specs=pl.BlockSpec(memory_space=pltpu.MemorySpace.VMEM),
        cost_estimate=cost,
    )(x, weight_t, bias_row)


if __name__ == "__main__":
    key = jax.random.PRNGKey(0)
    k_x, k_w, k_b = jax.random.split(key, 3)

    IN_FEATURES = 10
    OUT_FEATURES = 10
    BATCH = 8

    # Deterministic parameter init mimicking nn.Linear(10, 10):
    # uniform(-1/sqrt(in), 1/sqrt(in)) for both weight and bias.
    bound = 1.0 / jnp.sqrt(jnp.float32(IN_FEATURES))
    weight = jax.random.uniform(
        k_w, (OUT_FEATURES, IN_FEATURES), jnp.float32, -bound, bound
    )
    bias = jax.random.uniform(k_b, (OUT_FEATURES,), jnp.float32, -bound, bound)

    x = jax.random.normal(k_x, (BATCH, IN_FEATURES), jnp.float32)

    # One-time parameter prep (amortized; not on the per-call path).
    weight_t, bias_row = init_projection_params(weight, bias)
    weight_t, bias_row = jax.block_until_ready((weight_t, bias_row))

    y = linear_projection(x, weight_t, bias_row)
    y = jax.block_until_ready(y)

    # Cross-check against plain JAX reference (PyTorch orientation).
    y_ref = x @ weight.T + bias
    assert y.shape == (BATCH, OUT_FEATURES)
    assert jnp.allclose(y, y_ref, atol=1e-5, rtol=1e-5)

    print("KERNEL_OK")
</pallas_src>

<mosaic_0001>
module attributes {stable_mosaic.version = 11 : i64} {
  func.func @_linear_kernel(%arg0: memref<8x10xf32, #tpu.memory_space<vmem>>, %arg1: memref<10x10xf32, #tpu.memory_space<vmem>>, %arg2: memref<1x10xf32, #tpu.memory_space<vmem>>, %arg3: memref<8x10xf32, #tpu.memory_space<vmem>>) attributes {dimension_semantics = [], scalar_prefetch = 0 : i64, scratch_operands = 0 : i64, tpu.core_type = #tpu.core_type<tc>} {
    %c0 = arith.constant 0 : index
    %c0_0 = arith.constant 0 : index
    %0 = vector.load %arg0[%c0, %c0_0] : memref<8x10xf32, #tpu.memory_space<vmem>>, vector<8x10xf32>
    %c0_1 = arith.constant 0 : index
    %c0_2 = arith.constant 0 : index
    %1 = vector.load %arg1[%c0_1, %c0_2] : memref<10x10xf32, #tpu.memory_space<vmem>>, vector<10x10xf32>
    %cst = arith.constant dense<0.000000e+00> : vector<8x10xf32>
    %2 = tpu.matmul %0, %1, %cst {dimension_numbers = #tpu.dot_dimension_numbers<[1], [0], [0], [1], [0, 0, 1, 1], [], []>} : vector<8x10xf32>, vector<10x10xf32>, vector<8x10xf32> -> vector<8x10xf32>
    %c0_3 = arith.constant 0 : index
    %c0_4 = arith.constant 0 : index
    %3 = vector.load %arg2[%c0_3, %c0_4] : memref<1x10xf32, #tpu.memory_space<vmem>>, vector<1x10xf32>
    %4 = vector.broadcast %3 : vector<1x10xf32> to vector<8x10xf32>
    %5 = arith.addf %4, %2 : vector<8x10xf32>
    %c0_5 = arith.constant 0 : index
    %c0_6 = arith.constant 0 : index
    %6 = vector.load %arg3[%c0_5, %c0_6] : memref<8x10xf32, #tpu.memory_space<vmem>>, vector<8x10xf32>
    tpu.vector_store %arg3[%c0_5, %c0_6], %5 {strides = array<i32>} : memref<8x10xf32, #tpu.memory_space<vmem>>, vector<8x10xf32>,
    return
  }
}

</mosaic_0001>

<llo_original>
// kernel: tpu_custom_call.1
$region0: #{tpu_custom_call.1}
  #allocation0 [shape = 'u32[]', space=smem, size = 0x4, offset = 0x4, fixed_abs, tag = 'smem constant byte address 0x4 - core index']
  #allocation1 [shape = 'u32[144,128]{1,0:T(1,128)}', space=vmem, size = 0x12000, scoped, tag = 'internal scratch']
  %s0 = inlined_call_operand.hbm [shape: f32[8,10], index: 0, kind: input, shape index: {}]
  %s1 = inlined_call_operand.hbm [shape: f32[10,10], index: 1, kind: input, shape index: {}]
  %s2 = inlined_call_operand.vmem [shape: f32[1,10], index: 2, kind: input, shape index: {}]
  %s3 = inlined_call_operand.hbm [shape: f32[8,10], index: 3, kind: output, shape index: {}]
  %s4 = sld [smem:[#allocation0]]
  $region30: #{tpu_custom_call.1} parent=0
    _
  %s6 = ssub.s32 1, %s4
  %s7 = scalar_select 0, %s6, %s4
  $region1: #{tpu_custom_call.1} parent=0
    #allocation2 [shape = 'u8[4096]{0}', space=vmem, size = 0x1000, scoped, tag = 'input window, operand 0, single buffered']
    #allocation3 [shape = 's32[1]{0}', space=sflag, size = 0x4, scoped, tag = 'scoped memory for tpu_custom_call.1']
    #allocation4 [shape = 's32[1]{0}', space=sflag, size = 0x4, scoped, tag = 'scoped memory for tpu_custom_call.1']
    #allocation5 [shape = 'u8[8192]{0}', space=vmem, size = 0x2000, scoped, tag = 'input window, operand 1, single buffered']
    #allocation6 [shape = 's32[1]{0}', space=sflag, size = 0x4, scoped, tag = 'scoped memory for tpu_custom_call.1']
    #allocation7 [shape = 'u8[4096]{0}', space=vmem, size = 0x1000, scoped, tag = 'output window, operand 0, single buffered']
    %8 = vsyncpa [#allocation3], 0
    %9 = vsyncpa [#allocation6], 0
    %10 = vsyncpa [#allocation4], 0
    // Predicated region
    $region2: #{tpu_custom_call.1} parent=1 // pred_check
      _
    $region3: #{tpu_custom_call.1} parent=1 // pred_check_branch
      %12 = sbr.rel (0) target = $region5
    $region4: #{tpu_custom_call.1} parent=1 // pred_region
      %s14 = ssub.s32 128, 128
      %15 = vsyncadd [#allocation3], %s14
      %s17 = sshll.u32 [#allocation2], 4
      %s18 = int_to_ptr.vmem [resolvable:$true] %s17
      %20 = dma.hbm_to_vmem [thread:$0]  %s0, 128, %s18, [#allocation3]
    $region5: #{tpu_custom_call.1} parent=1 // pred_fallthru
      _
    // Predicated region
    $region6: #{tpu_custom_call.1} parent=1 // pred_check
      _
    $region7: #{tpu_custom_call.1} parent=1 // pred_check_branch
      %22 = sbr.rel (0) target = $region9
    $region8: #{tpu_custom_call.1} parent=1 // pred_region
      %s24 = ssub.s32 256, 256
      %25 = vsyncadd [#allocation6], %s24
      %s26 = sshll.u32 [#allocation5], 4
      %s27 = int_to_ptr.vmem [resolvable:$true] %s26
      %32 = dma.hbm_to_vmem [thread:$0]  %s1, 256, %s27, [#allocation6], 128, 128, 8
    $region9: #{tpu_custom_call.1} parent=1 // pred_fallthru
      _
    // Predicated region
    $region10: #{tpu_custom_call.1} parent=1 // pred_check
      _
    $region11: #{tpu_custom_call.1} parent=1 // pred_check_branch
      %34 = sbr.rel (0) target = $region13
    $region12: #{tpu_custom_call.1} parent=1 // pred_region
      _
    $region13: #{tpu_custom_call.1} parent=1 // pred_fallthru
      _
    // Predicated region
    $region14: #{tpu_custom_call.1} parent=1 // pred_check
      _
    $region15: #{tpu_custom_call.1} parent=1 // pred_check_branch
      %36 = sbr.rel (0) target = $region17
    $region16: #{tpu_custom_call.1} parent=1 // pred_region
      %37 = dma.done [#allocation3], 128
    $region17: #{tpu_custom_call.1} parent=1 // pred_fallthru
      _
    // Predicated region
    $region18: #{tpu_custom_call.1} parent=1 // pred_check
      _
    $region19: #{tpu_custom_call.1} parent=1 // pred_check_branch
      %39 = sbr.rel (0) target = $region21
    $region20: #{tpu_custom_call.1} parent=1 // pred_region
      %40 = dma.done [#allocation6], 256
    $region21: #{tpu_custom_call.1} parent=1 // pred_fallthru
      _
    %v41 = vld [vmem:[#allocation2] sm:$0xff]
    %v42 = vld [vmem:[#allocation5] sm:$0xff]
    %v43 = vld [vmem:[#allocation5 + $0x8] sm:$0x3]
    %vm44 = vcmask 80896
    %v46 = vsel %vm44, %v41, 0
    %vm48 = vcmask 1041408
    %v50 = vsel %vm48, %v43, 0
    %52 = vmatprep.subr.mxu0 0.0
    %53 = vmatpush1.msra.mxu0 %v42
    %54 = vmatprep.subr.mxu0 0.0
    %55 = vmatpush1.msra.mxu0 %v50
    %56 = vmatprep.subr.mxu0 0.0
    %57 = vmatpush1.msra.mxu0 0.0
    %58 = vmatprep.subr.mxu0 0.0
    %59 = vmatpush1.msra.mxu0 0.0
    %60 = vmatprep.subr.mxu0 0.0
    %61 = vmatpush1.msra.mxu0 0.0
    %62 = vmatprep.subr.mxu0 0.0
    %63 = vmatpush1.msra.mxu0 0.0
    %64 = vmatprep.subr.mxu0 0.0
    %65 = vmatpush1.msra.mxu0 0.0
    %66 = vmatprep.subr.mxu0 0.0
    %67 = vmatpush1.msra.mxu0 0.0
    %68 = vmatprep.subr.mxu0 0.0
    %69 = vmatpush1.msra.mxu0 0.0
    %70 = vmatprep.subr.mxu0 0.0
    %71 = vmatpush1.msra.mxu0 0.0
    %72 = vmatprep.subr.mxu0 0.0
    %73 = vmatpush1.msra.mxu0 0.0
    %74 = vmatprep.subr.mxu0 0.0
    %75 = vmatpush1.msra.mxu0 0.0
    %76 = vmatprep.subr.mxu0 0.0
    %77 = vmatpush1.msra.mxu0 0.0
    %78 = vmatprep.subr.mxu0 0.0
    %79 = vmatpush1.msra.mxu0 0.0
    %80 = vmatprep.subr.mxu0 0.0
    %81 = vmatpush1.msra.mxu0 0.0
    %82 = vmatprep.subr.mxu0 0.0
    %83 = vmatpush1.msra.mxu0 0.0
    %84 = vmatprep.subr.mxu0 0.0
    %85 = vmatpush1.msra.mxu0 0.0
    %86 = vmatprep.subr.mxu0 0.0
    %87 = vmatpush1.msra.mxu0 0.0
    %88 = vmatprep.subr.mxu0 0.0
    %89 = vmatpush1.msra.mxu0 0.0
    %90 = vmatprep.subr.mxu0 0.0
    %91 = vmatpush1.msra.mxu0 0.0
    %92 = vmatprep.subr.mxu0 0.0
    %93 = vmatpush1.msra.mxu0 0.0
    %94 = vmatprep.subr.mxu0 0.0
    %95 = vmatpush1.msra.mxu0 0.0
    %96 = vmatprep.subr.mxu0 0.0
    %97 = vmatpush1.msra.mxu0 0.0
    %98 = vmatprep.subr.mxu0 0.0
    %99 = vmatpush1.msra.mxu0 0.0
    %100 = vmatprep.subr.mxu0 0.0
    %101 = vmatpush1.msra.mxu0 0.0
    %102 = vmatprep.subr.mxu0 0.0
    %103 = vmatpush1.msra.mxu0 0.0
    %104 = vmatprep.subr.mxu0 0.0
    %105 = vmatpush1.msra.mxu0 0.0
    %106 = vmatprep.subr.mxu0 0.0
    %107 = vmatpush1.msra.mxu0 0.0
    %108 = vmatprep.subr.mxu0 0.0
    %109 = vmatpush1.msra.mxu0 0.0
    %110 = vmatprep.subr.mxu0 0.0
    %111 = vmatpush1.msra.mxu0 0.0
    %112 = vmatprep.subr.mxu0 0.0
    %113 = vmatpush1.msra.mxu0 0.0
    %114 = vmatprep.subr.mxu0 0.0
    %115 = vmatpush1.msra.mxu0 0.0
    %116 = vmatprep.mubr.f32.mxu0 0.0
    %117 = vmatmul.mubr.f32.gmra.mrb[0].mxu0 %v46
    %v118 = vpop.f32.mrb[0].mxu0
    %v119 = vadd.f32 0.0, %v118
    %v120 = vpop.f32.mrb[0].mxu0
    %121 = vdwg.mxu0
    %v122 = vld [vmem:[%s2] sm:$0x1]
    %v124 = vlaneseq
    %v125 = vshrl.u32 %v124, 7
    %v126 = vsub.s32 0, %v125
    %v127 = vrot.slane %v122, %v126
    %v129 = vadd.f32 %v127, %v119
    %130 = vst.msk [vmem:[#allocation7] sm:$0xff] %vm44, %v129
    // Predicated region
    $region22: #{tpu_custom_call.1} parent=1 // pred_check
      _
    $region23: #{tpu_custom_call.1} parent=1 // pred_check_branch
      %132 = sbr.rel (0) target = $region25
    $region24: #{tpu_custom_call.1} parent=1 // pred_region
      %s134 = ssub.s32 128, 128
      %135 = vsyncadd [#allocation4], %s134
      %s137 = sshll.u32 [#allocation7], 4
      %s138 = int_to_ptr.vmem [resolvable:$true] %s137
      %140 = dma.vmem_to_hbm [thread:$0]  %s138, 128, %s3, [#allocation4]
    $region25: #{tpu_custom_call.1} parent=1 // pred_fallthru
      _
    // Predicated region
    $region26: #{tpu_custom_call.1} parent=1 // pred_check
      _
    $region27: #{tpu_custom_call.1} parent=1 // pred_check_branch
      %142 = sbr.rel (0) target = $region29
    $region28: #{tpu_custom_call.1} parent=1 // pred_region
      %143 = dma.done [#allocation4], 128
    $region29: #{tpu_custom_call.1} parent=1 // pred_fallthru
      _
    %144 = vsyncpa [#allocation3], 1
    %145 = vsyncpa [#allocation6], 1
    %146 = vsyncpa [#allocation4], 1

</llo_original>
